<compile_context>
chip_gen: v6e
topology: v6e:2x2x1
jax: 0.10.0
libtpu: 0.0.40
codegen_flags: <defaults>
</compile_context>

<pallas_src>
import functools

import jax
import jax.numpy as jnp
from jax import lax
from jax.experimental import pallas as pl
from jax.experimental.pallas import tpu as pltpu


def _attn_kernel(hid_ref, enc_ref, out_ref, *, s_actual, use_mxu):
    # hid_ref: (TB, H), enc_ref: (TB, S_pad, H), out_ref: (TB, S_pad)
    h = hid_ref[...].astype(jnp.float32)          # (TB, H)
    e = enc_ref[...].astype(jnp.float32)          # (TB, S_pad, H)

    if use_mxu:
        # Batched matvec on the MXU: contract the hidden dim.
        scores = jnp.einsum("bsh,bh->bs", e, h,
                            preferred_element_type=jnp.float32)
    else:
        # Small H: VPU elementwise multiply + XLU lane reduce.
        scores = jnp.sum(e * h[:, None, :], axis=-1)          # (TB, S_pad)

    # Mask the padded seq lanes so they contribute exp(-inf) = 0.
    lane = lax.broadcasted_iota(jnp.int32, scores.shape, 1)
    scores = jnp.where(lane < s_actual, scores, -jnp.inf)

    # Numerically stable softmax over the (lane-dense) seq axis.
    m = jnp.max(scores, axis=-1, keepdims=True)
    p = jnp.exp(scores - m)
    denom = jnp.sum(p, axis=-1, keepdims=True)
    # Exact reciprocal to preserve parity with the PyTorch reference (1e-5).
    out_ref[...] = (p * pl.reciprocal(denom, approx=False)).astype(out_ref.dtype)


def _round_up(x, m):
    return (x + m - 1) // m * m


def _pick_batch_tile(B, S_pad, H, budget_bytes=4 << 20):
    """Largest batch tile whose encoder block stays under the VMEM budget.

    Budget is conservative (4 MiB per block -> 8 MiB double-buffered), which
    fits v5e's 16 MiB scoped-VMEM default and v7x's 32 MiB scoped / 64 MiB
    physical without any explicit vmem_limit_bytes bump.
    """
    bytes_per_batch_row = S_pad * H * 4
    max_rows = max(1, budget_bytes // bytes_per_batch_row)
    if B <= max_rows:
        return B                      # full-B block (always legal)
    tb = (max_rows // 8) * 8          # second-last dim must be a multiple of 8
    return max(tb, 8)


def attn_forward(hidden, encoder_outputs):
    """hidden: (1, B, H) f32, encoder_outputs: (S, B, H) f32 -> (B, 1, S) f32."""
    _, B, H = hidden.shape
    S = encoder_outputs.shape[0]
    S_pad = _round_up(S, 128)

    # Wrapper-side layout plumbing (free relative to the kernel):
    hid = hidden[0].astype(jnp.float32)                                  # (B, H)
    enc = jnp.transpose(encoder_outputs, (1, 0, 2)).astype(jnp.float32)  # (B, S, H)
    if S_pad != S:
        enc = jnp.pad(enc, ((0, 0), (0, S_pad - S), (0, 0)))             # (B, S_pad, H)

    TB = _pick_batch_tile(B, S_pad, H)
    grid = (pl.cdiv(B, TB),)
    use_mxu = H >= 256

    kernel = functools.partial(_attn_kernel, s_actual=S, use_mxu=use_mxu)

    out2d = pl.pallas_call(
        kernel,
        out_shape=jax.ShapeDtypeStruct((B, S_pad), jnp.float32),
        grid=grid,
        in_specs=[
            pl.BlockSpec((TB, H), lambda i: (i, 0)),
            pl.BlockSpec((TB, S_pad, H), lambda i: (i, 0, 0)),
        ],
        out_specs=pl.BlockSpec((TB, S_pad), lambda i: (i, 0)),
        compiler_params=pltpu.CompilerParams(
            dimension_semantics=("parallel",),   # batch axis shards across TCs on v7x
        ),
    )(hid, enc)

    # Slice off the lane padding and do the unsqueeze(1) outside the kernel.
    return out2d[:, :S][:, None, :]


def init_params(method, hidden_size, key):
    """Deterministic parameter init mirroring Attn.__init__ (unused in forward)."""
    params = {}
    if method == "general":
        kw, kb = jax.random.split(key)
        bound = 1.0 / jnp.sqrt(hidden_size)
        params["attn_w"] = jax.random.uniform(
            kw, (hidden_size, hidden_size), jnp.float32, -bound, bound
        )
        params["attn_b"] = jax.random.uniform(
            kb, (hidden_size,), jnp.float32, -bound, bound
        )
    return params


if __name__ == "__main__":
    key = jax.random.PRNGKey(0)
    k_h, k_e, k_p = jax.random.split(key, 3)

    S, B, H = 8, 2, 32  # seq_len, batch, hidden_size
    hidden = jax.random.normal(k_h, (1, B, H), dtype=jnp.float32)
    encoder_outputs = jax.random.normal(k_e, (S, B, H), dtype=jnp.float32)

    # Parameters exist only to mirror __init__ ('dot' method has none).
    _ = init_params("dot", H, k_p)

    out = attn_forward(hidden, encoder_outputs)
    out = jax.block_until_ready(out)

    # Reference check in plain JAX (same math as the PyTorch forward).
    scores_ref = jnp.sum(hidden * encoder_outputs, axis=2).T          # (B, S)
    ref = jax.nn.softmax(scores_ref, axis=1)[:, None, :]              # (B, 1, S)
    assert out.shape == (B, 1, S)
    assert jnp.allclose(out, ref, atol=1e-5, rtol=1e-5)

    print("KERNEL_OK")
</pallas_src>

<mosaic_0001>
module attributes {stable_mosaic.version = 11 : i64} {
  func.func @_attn_kernel(%arg0: i32, %arg1: memref<2x32xf32, #tpu.memory_space<vmem>>, %arg2: memref<2x128x32xf32, #tpu.memory_space<vmem>>, %arg3: memref<2x128xf32, #tpu.memory_space<vmem>>) attributes {dimension_semantics = [#tpu.dimension_semantics<parallel>], iteration_bounds = array<i64: 1>, scalar_prefetch = 0 : i64, scratch_operands = 0 : i64, tpu.core_type = #tpu.core_type<tc>, window_params = [{transform_indices = @transform_0, window_bounds = array<i64: 2, 32>}, {transform_indices = @transform_1, window_bounds = array<i64: 2, 128, 32>}, {transform_indices = @transform_2, window_bounds = array<i64: 2, 128>}]} {
    %c0 = arith.constant 0 : index
    %c0_0 = arith.constant 0 : index
    %0 = vector.load %arg1[%c0, %c0_0] : memref<2x32xf32, #tpu.memory_space<vmem>>, vector<2x32xf32>
    %c0_1 = arith.constant 0 : index
    %c0_2 = arith.constant 0 : index
    %c0_3 = arith.constant 0 : index
    %1 = vector.load %arg2[%c0_1, %c0_2, %c0_3] : memref<2x128x32xf32, #tpu.memory_space<vmem>>, vector<2x128x32xf32>
    %2 = vector.shape_cast %0 : vector<2x32xf32> to vector<2x1x32xf32>
    %3 = vector.broadcast %2 : vector<2x1x32xf32> to vector<2x128x32xf32>
    %4 = arith.mulf %1, %3 : vector<2x128x32xf32>
    %cst = arith.constant dense<0.000000e+00> : vector<2x128xf32>
    %5 = vector.multi_reduction <add>, %4, %cst [2] : vector<2x128x32xf32> to vector<2x128xf32>
    %6 = tpu.iota {dimensions = array<i32: 1>} : vector<2x128xi32>
    %c8_i32 = arith.constant 8 : i32
    %7 = vector.broadcast %c8_i32 : i32 to vector<2x128xi32>
    %8 = arith.cmpi slt, %6, %7 : vector<2x128xi32>
    %cst_4 = arith.constant 0xFF800000 : f32
    %9 = vector.broadcast %cst_4 : f32 to vector<2x128xf32>
    %10 = arith.select %8, %5, %9 : vector<2x128xi1>, vector<2x128xf32>
    %cst_5 = arith.constant dense<0xFF800000> : vector<2xf32>
    %11 = vector.multi_reduction <maximumf>, %10, %cst_5 [1] : vector<2x128xf32> to vector<2xf32>
    %12 = vector.shape_cast %11 : vector<2xf32> to vector<2x1xf32>
    %13 = vector.broadcast %12 : vector<2x1xf32> to vector<2x128xf32>
    %14 = arith.subf %10, %13 : vector<2x128xf32>
    %15 = math.exp %14 : vector<2x128xf32>
    %cst_6 = arith.constant dense<0.000000e+00> : vector<2xf32>
    %16 = vector.multi_reduction <add>, %15, %cst_6 [1] : vector<2x128xf32> to vector<2xf32>
    %17 = vector.shape_cast %16 : vector<2xf32> to vector<2x1xf32>
    %18 = tpu.reciprocal %17 : vector<2x1xf32> -> vector<2x1xf32>
    %19 = vector.broadcast %18 : vector<2x1xf32> to vector<2x128xf32>
    %20 = arith.mulf %15, %19 : vector<2x128xf32>
    %c0_7 = arith.constant 0 : index
    %c0_8 = arith.constant 0 : index
    %21 = vector.load %arg3[%c0_7, %c0_8] : memref<2x128xf32, #tpu.memory_space<vmem>>, vector<2x128xf32>
    tpu.vector_store %arg3[%c0_7, %c0_8], %20 {strides = array<i32>} : memref<2x128xf32, #tpu.memory_space<vmem>>, vector<2x128xf32>,
    return
  }
  func.func @transform_0(%arg0: i32) -> (i32, i32) {
    %c0_i32 = arith.constant 0 : i32
    %c0_i32_0 = arith.constant 0 : i32
    return %arg0, %c0_i32 : i32, i32
  }
  func.func @transform_1(%arg0: i32) -> (i32, i32, i32) {
    %c0_i32 = arith.constant 0 : i32
    %c0_i32_0 = arith.constant 0 : i32
    %c0_i32_1 = arith.constant 0 : i32
    return %arg0, %c0_i32, %c0_i32_0 : i32, i32, i32
  }
  func.func @transform_2(%arg0: i32) -> (i32, i32) {
    %c0_i32 = arith.constant 0 : i32
    %c0_i32_0 = arith.constant 0 : i32
    return %arg0, %c0_i32 : i32, i32
  }
}

</mosaic_0001>

<llo_original>
// kernel: tpu_custom_call.1
$region0: #{tpu_custom_call.1}
  #allocation0 [shape = 'u32[]', space=smem, size = 0x4, offset = 0x4, fixed_abs, tag = 'smem constant byte address 0x4 - core index']
  #allocation1 [shape = 'u32[144,128]{1,0:T(1,128)}', space=vmem, size = 0x12000, scoped, tag = 'internal scratch']
  %s0 = inlined_call_operand.vmem [shape: f32[2,32], index: 0, kind: input, shape index: {}]
  %s1 = inlined_call_operand.vmem [shape: f32[2,128,32], index: 1, kind: input, shape index: {}]
  %s2 = inlined_call_operand.hbm [shape: f32[2,128], index: 2, kind: output, shape index: {}]
  %s3 = sld [smem:[#allocation0]]
  $region18: #{tpu_custom_call.1} parent=0
    _
  %s5 = ssub.s32 1, %s3
  %s6 = scalar_select 0, %s5, %s3
  $region1: #{tpu_custom_call.1} parent=0
    #allocation2 [shape = 'u8[1024]{0}', space=vmem, size = 0x400, scoped, tag = 'output window, operand 0, single buffered']
    #allocation3 [shape = 's32[1]{0}', space=sflag, size = 0x4, scoped, tag = 'scoped memory for tpu_custom_call.1']
    %7 = vsyncpa [#allocation3], 0
    // Predicated region
    $region2: #{tpu_custom_call.1} parent=1 // pred_check
      _
    $region3: #{tpu_custom_call.1} parent=1 // pred_check_branch
      %9 = sbr.rel (0) target = $region5
    $region4: #{tpu_custom_call.1} parent=1 // pred_region
      _
    $region5: #{tpu_custom_call.1} parent=1 // pred_fallthru
      _
    // Predicated region
    $region6: #{tpu_custom_call.1} parent=1 // pred_check
      _
    $region7: #{tpu_custom_call.1} parent=1 // pred_check_branch
      %11 = sbr.rel (0) target = $region9
    $region8: #{tpu_custom_call.1} parent=1 // pred_region
      _
    $region9: #{tpu_custom_call.1} parent=1 // pred_fallthru
      _
    %v12 = vld [vmem:[%s0] sm:$0x3]
    %v13 = vld [vmem:[%s1] sm:$0xff]
    %v14 = vld [vmem:[%s1 + $0x8] sm:$0xff]
    %v15 = vld [vmem:[%s1 + $0x10] sm:$0xff]
    %v16 = vld [vmem:[%s1 + $0x18] sm:$0xff]
    %v17 = vld [vmem:[%s1 + $0x20] sm:$0xff]
    %v18 = vld [vmem:[%s1 + $0x28] sm:$0xff]
    %v19 = vld [vmem:[%s1 + $0x30] sm:$0xff]
    %v20 = vld [vmem:[%s1 + $0x38] sm:$0xff]
    %v21 = vld [vmem:[%s1 + $0x40] sm:$0xff]
    %v22 = vld [vmem:[%s1 + $0x48] sm:$0xff]
    %v23 = vld [vmem:[%s1 + $0x50] sm:$0xff]
    %v24 = vld [vmem:[%s1 + $0x58] sm:$0xff]
    %v25 = vld [vmem:[%s1 + $0x60] sm:$0xff]
    %v26 = vld [vmem:[%s1 + $0x68] sm:$0xff]
    %v27 = vld [vmem:[%s1 + $0x70] sm:$0xff]
    %v28 = vld [vmem:[%s1 + $0x78] sm:$0xff]
    %v29 = vld [vmem:[%s1 + $0x80] sm:$0xff]
    %v30 = vld [vmem:[%s1 + $0x88] sm:$0xff]
    %v31 = vld [vmem:[%s1 + $0x90] sm:$0xff]
    %v32 = vld [vmem:[%s1 + $0x98] sm:$0xff]
    %v33 = vld [vmem:[%s1 + $0xa0] sm:$0xff]
    %v34 = vld [vmem:[%s1 + $0xa8] sm:$0xff]
    %v35 = vld [vmem:[%s1 + $0xb0] sm:$0xff]
    %v36 = vld [vmem:[%s1 + $0xb8] sm:$0xff]
    %v37 = vld [vmem:[%s1 + $0xc0] sm:$0xff]
    %v38 = vld [vmem:[%s1 + $0xc8] sm:$0xff]
    %v39 = vld [vmem:[%s1 + $0xd0] sm:$0xff]
    %v40 = vld [vmem:[%s1 + $0xd8] sm:$0xff]
    %v41 = vld [vmem:[%s1 + $0xe0] sm:$0xff]
    %v42 = vld [vmem:[%s1 + $0xe8] sm:$0xff]
    %v43 = vld [vmem:[%s1 + $0xf0] sm:$0xff]
    %v44 = vld [vmem:[%s1 + $0xf8] sm:$0xff]
    %v47 = vunpack.c.l.s4 1966171168
    %v48 = vunpack.c.0.s8 %v47
    %v49 = vlaneseq
    %v50 = vshrl.u32 %v49, 7
    %v51 = vsub.s32 %v48, %v50
    %v52 = vrot.slane %v12, %v51
    %v53 = vcombine.high %v52, %v52
    %v55 = vunpack.c.l.s4 1966171168
    %v56 = vunpack.c.0.s8 %v55
    %v57 = vlaneseq
    %v58 = vshrl.u32 %v57, 7
    %v59 = vsub.s32 %v56, %v58
    %v60 = vrot.slane %v52, %v59
    %v62 = vunpack.c.l.s4 1966171168
    %v63 = vunpack.c.0.s8 %v62
    %v64 = vlaneseq
    %v65 = vshrl.u32 %v64, 7
    %v66 = vsub.s32 %v63, %v65
    %v67 = vrot.slane %v53, %v66
    %v68 = vlaneseq
    %v69 = vshrl.u32 %v68, 7
    %v70 = vsub.s32 0, %v69
    %v71 = vrot.slane %v60, %v70
    %v72 = vlaneseq
    %v73 = vshrl.u32 %v72, 7
    %v74 = vsub.s32 0, %v73
    %v75 = vrot.slane %v67, %v74
    %v78 = vmul.f32 %v13, %v71
    %v79 = vmul.f32 %v14, %v71
    %v80 = vmul.f32 %v15, %v71
    %v81 = vmul.f32 %v16, %v71
    %v82 = vmul.f32 %v17, %v71
    %v83 = vmul.f32 %v18, %v71
    %v84 = vmul.f32 %v19, %v71
    %v85 = vmul.f32 %v20, %v71
    %v86 = vmul.f32 %v21, %v71
    %v87 = vmul.f32 %v22, %v71
    %v88 = vmul.f32 %v23, %v71
    %v89 = vmul.f32 %v24, %v71
    %v90 = vmul.f32 %v25, %v71
    %v91 = vmul.f32 %v26, %v71
    %v92 = vmul.f32 %v27, %v71
    %v93 = vmul.f32 %v28, %v71
    %v94 = vmul.f32 %v29, %v75
    %v95 = vmul.f32 %v30, %v75
    %v96 = vmul.f32 %v31, %v75
    %v97 = vmul.f32 %v32, %v75
    %v98 = vmul.f32 %v33, %v75
    %v99 = vmul.f32 %v34, %v75
    %v100 = vmul.f32 %v35, %v75
    %v101 = vmul.f32 %v36, %v75
    %v102 = vmul.f32 %v37, %v75
    %v103 = vmul.f32 %v38, %v75
    %v104 = vmul.f32 %v39, %v75
    %v105 = vmul.f32 %v40, %v75
    %v106 = vmul.f32 %v41, %v75
    %v107 = vmul.f32 %v42, %v75
    %v108 = vmul.f32 %v43, %v75
    %v109 = vmul.f32 %v44, %v75
    %vm110 = vcmask 261120
    %v111 = vsel %vm110, %v78, 0.0
    %112 = vadd.xlane.f32.xlu0 %v111
    %v113 = vpop.xlane.xlu0 %112
    %v114 = vsel %vm110, %v79, 0.0
    %115 = vadd.xlane.f32.xlu0 %v114
    %v116 = vpop.xlane.xlu0 %115
    %v117 = vsel %vm110, %v80, 0.0
    %118 = vadd.xlane.f32.xlu0 %v117
    %v119 = vpop.xlane.xlu0 %118
    %v120 = vsel %vm110, %v81, 0.0
    %121 = vadd.xlane.f32.xlu0 %v120
    %v122 = vpop.xlane.xlu0 %121
    %v123 = vsel %vm110, %v82, 0.0
    %124 = vadd.xlane.f32.xlu0 %v123
    %v125 = vpop.xlane.xlu0 %124
    %v126 = vsel %vm110, %v83, 0.0
    %127 = vadd.xlane.f32.xlu0 %v126
    %v128 = vpop.xlane.xlu0 %127
    %v129 = vsel %vm110, %v84, 0.0
    %130 = vadd.xlane.f32.xlu0 %v129
    %v131 = vpop.xlane.xlu0 %130
    %v132 = vsel %vm110, %v85, 0.0
    %133 = vadd.xlane.f32.xlu0 %v132
    %v134 = vpop.xlane.xlu0 %133
    %v135 = vsel %vm110, %v86, 0.0
    %136 = vadd.xlane.f32.xlu0 %v135
    %v137 = vpop.xlane.xlu0 %136
    %v138 = vsel %vm110, %v87, 0.0
    %139 = vadd.xlane.f32.xlu0 %v138
    %v140 = vpop.xlane.xlu0 %139
    %v141 = vsel %vm110, %v88, 0.0
    %142 = vadd.xlane.f32.xlu0 %v141
    %v143 = vpop.xlane.xlu0 %142
    %v144 = vsel %vm110, %v89, 0.0
    %145 = vadd.xlane.f32.xlu0 %v144
    %v146 = vpop.xlane.xlu0 %145
    %v147 = vsel %vm110, %v90, 0.0
    %148 = vadd.xlane.f32.xlu0 %v147
    %v149 = vpop.xlane.xlu0 %148
    %v150 = vsel %vm110, %v91, 0.0
    %151 = vadd.xlane.f32.xlu0 %v150
    %v152 = vpop.xlane.xlu0 %151
    %v153 = vsel %vm110, %v92, 0.0
    %154 = vadd.xlane.f32.xlu0 %v153
    %v155 = vpop.xlane.xlu0 %154
    %v156 = vsel %vm110, %v93, 0.0
    %157 = vadd.xlane.f32.xlu0 %v156
    %v158 = vpop.xlane.xlu0 %157
    %v159 = vsel %vm110, %v94, 0.0
    %160 = vadd.xlane.f32.xlu0 %v159
    %v161 = vpop.xlane.xlu0 %160
    %v162 = vsel %vm110, %v95, 0.0
    %163 = vadd.xlane.f32.xlu0 %v162
    %v164 = vpop.xlane.xlu0 %163
    %v165 = vsel %vm110, %v96, 0.0
    %166 = vadd.xlane.f32.xlu0 %v165
    %v167 = vpop.xlane.xlu0 %166
    %v168 = vsel %vm110, %v97, 0.0
    %169 = vadd.xlane.f32.xlu0 %v168
    %v170 = vpop.xlane.xlu0 %169
    %v171 = vsel %vm110, %v98, 0.0
    %172 = vadd.xlane.f32.xlu0 %v171
    %v173 = vpop.xlane.xlu0 %172
    %v174 = vsel %vm110, %v99, 0.0
    %175 = vadd.xlane.f32.xlu0 %v174
    %v176 = vpop.xlane.xlu0 %175
    %v177 = vsel %vm110, %v100, 0.0
    %178 = vadd.xlane.f32.xlu0 %v177
    %v179 = vpop.xlane.xlu0 %178
    %v180 = vsel %vm110, %v101, 0.0
    %181 = vadd.xlane.f32.xlu0 %v180
    %v182 = vpop.xlane.xlu0 %181
    %v183 = vsel %vm110, %v102, 0.0
    %184 = vadd.xlane.f32.xlu0 %v183
    %v185 = vpop.xlane.xlu0 %184
    %v186 = vsel %vm110, %v103, 0.0
    %187 = vadd.xlane.f32.xlu0 %v186
    %v188 = vpop.xlane.xlu0 %187
    %v189 = vsel %vm110, %v104, 0.0
    %190 = vadd.xlane.f32.xlu0 %v189
    %v191 = vpop.xlane.xlu0 %190
    %v192 = vsel %vm110, %v105, 0.0
    %193 = vadd.xlane.f32.xlu0 %v192
    %v194 = vpop.xlane.xlu0 %193
    %v195 = vsel %vm110, %v106, 0.0
    %196 = vadd.xlane.f32.xlu0 %v195
    %v197 = vpop.xlane.xlu0 %196
    %v198 = vsel %vm110, %v107, 0.0
    %199 = vadd.xlane.f32.xlu0 %v198
    %v200 = vpop.xlane.xlu0 %199
    %v201 = vsel %vm110, %v108, 0.0
    %202 = vadd.xlane.f32.xlu0 %v201
    %v203 = vpop.xlane.xlu0 %202
    %v204 = vsel %vm110, %v109, 0.0
    %205 = vadd.xlane.f32.xlu0 %v204
    %v206 = vpop.xlane.xlu0 %205
    %v207 = vlaneseq
    %v208 = vand.u32 %v207, 127
    %vm209 = vcmp.lt.s32.totalorder %v208, 8
    %v242 = vlaneseq
    %v243 = vshrl.u32 %v242, 7
    %v244 = vsub.s32 %v208, %v243
    %v245 = vrot.slane %v113, %v244
    %v246 = vadd.s32 %v208, 4294967288
    %v247 = vlaneseq
    %v248 = vshrl.u32 %v247, 7
    %v249 = vsub.s32 %v246, %v248
    %v250 = vrot.slane %v116, %v249
    %vm251 = vcmask 130112
    %v252 = vsel %vm251, %v250, %v245
    %v253 = vadd.s32 %v208, 4294967280
    %v254 = vlaneseq
    %v255 = vshrl.u32 %v254, 7
    %v256 = vsub.s32 %v253, %v255
    %v257 = vrot.slane %v119, %v256
    %vm258 = vcmask 195712
    %v259 = vsel %vm258, %v257, %v252
    %v260 = vadd.s32 %v208, 4294967272
    %v261 = vlaneseq
    %v262 = vshrl.u32 %v261, 7
    %v263 = vsub.s32 %v260, %v262
    %v264 = vrot.slane %v122, %v263
    %vm265 = vcmask 261312
    %v266 = vsel %vm265, %v264, %v259
    %v267 = vadd.s32 %v208, 4294967264
    %v268 = vlaneseq
    %v269 = vshrl.u32 %v268, 7
    %v270 = vsub.s32 %v267, %v269
    %v271 = vrot.slane %v125, %v270
    %vm272 = vcmask 326912
    %v273 = vsel %vm272, %v271, %v266
    %v274 = vadd.s32 %v208, 4294967256
    %v275 = vlaneseq
    %v276 = vshrl.u32 %v275, 7
    %v277 = vsub.s32 %v274, %v276
    %v278 = vrot.slane %v128, %v277
    %vm279 = vcmask 392512
    %v280 = vsel %vm279, %v278, %v273
    %v281 = vadd.s32 %v208, 4294967248
    %v282 = vlaneseq
    %v283 = vshrl.u32 %v282, 7
    %v284 = vsub.s32 %v281, %v283
    %v285 = vrot.slane %v131, %v284
    %vm286 = vcmask 458112
    %v287 = vsel %vm286, %v285, %v280
    %v288 = vadd.s32 %v208, 4294967240
    %v289 = vlaneseq
    %v290 = vshrl.u32 %v289, 7
    %v291 = vsub.s32 %v288, %v290
    %v292 = vrot.slane %v134, %v291
    %vm293 = vcmask 523712
    %v294 = vsel %vm293, %v292, %v287
    %v295 = vadd.s32 %v208, 4294967232
    %v296 = vlaneseq
    %v297 = vshrl.u32 %v296, 7
    %v298 = vsub.s32 %v295, %v297
    %v299 = vrot.slane %v137, %v298
    %vm300 = vcmask 589312
    %v301 = vsel %vm300, %v299, %v294
    %v302 = vadd.s32 %v208, 4294967224
    %v303 = vlaneseq
    %v304 = vshrl.u32 %v303, 7
    %v305 = vsub.s32 %v302, %v304
    %v306 = vrot.slane %v140, %v305
    %vm307 = vcmask 654912
    %v308 = vsel %vm307, %v306, %v301
    %v309 = vadd.s32 %v208, 4294967216
    %v310 = vlaneseq
    %v311 = vshrl.u32 %v310, 7
    %v312 = vsub.s32 %v309, %v311
    %v313 = vrot.slane %v143, %v312
    %vm314 = vcmask 720512
    %v315 = vsel %vm314, %v313, %v308
    %v316 = vadd.s32 %v208, 4294967208
    %v317 = vlaneseq
    %v318 = vshrl.u32 %v317, 7
    %v319 = vsub.s32 %v316, %v318
    %v320 = vrot.slane %v146, %v319
    %vm321 = vcmask 786112
    %v322 = vsel %vm321, %v320, %v315
    %v323 = vadd.s32 %v208, 4294967200
    %v324 = vlaneseq
    %v325 = vshrl.u32 %v324, 7
    %v326 = vsub.s32 %v323, %v325
    %v327 = vrot.slane %v149, %v326
    %vm328 = vcmask 851712
    %v329 = vsel %vm328, %v327, %v322
    %v330 = vadd.s32 %v208, 4294967192
    %v331 = vlaneseq
    %v332 = vshrl.u32 %v331, 7
    %v333 = vsub.s32 %v330, %v332
    %v334 = vrot.slane %v152, %v333
    %vm335 = vcmask 917312
    %v336 = vsel %vm335, %v334, %v329
    %v337 = vadd.s32 %v208, 4294967184
    %v338 = vlaneseq
    %v339 = vshrl.u32 %v338, 7
    %v340 = vsub.s32 %v337, %v339
    %v341 = vrot.slane %v155, %v340
    %vm342 = vcmask 982912
    %v343 = vsel %vm342, %v341, %v336
    %v344 = vadd.s32 %v208, 4294967176
    %v345 = vlaneseq
    %v346 = vshrl.u32 %v345, 7
    %v347 = vsub.s32 %v344, %v346
    %v348 = vrot.slane %v158, %v347
    %vm349 = vcmask 1048512
    %v350 = vsel %vm349, %v348, %v343
    %v351 = vlaneseq
    %v352 = vshrl.u32 %v351, 7
    %v353 = vsub.s32 %v208, %v352
    %v354 = vrot.slane %v161, %v353
    %v355 = vlaneseq
    %v356 = vshrl.u32 %v355, 7
    %v357 = vsub.s32 %v246, %v356
    %v358 = vrot.slane %v164, %v357
    %v359 = vsel %vm251, %v358, %v354
    %v360 = vlaneseq
    %v361 = vshrl.u32 %v360, 7
    %v362 = vsub.s32 %v253, %v361
    %v363 = vrot.slane %v167, %v362
    %v364 = vsel %vm258, %v363, %v359
    %v365 = vlaneseq
    %v366 = vshrl.u32 %v365, 7
    %v367 = vsub.s32 %v260, %v366
    %v368 = vrot.slane %v170, %v367
    %v369 = vsel %vm265, %v368, %v364
    %v370 = vlaneseq
    %v371 = vshrl.u32 %v370, 7
    %v372 = vsub.s32 %v267, %v371
    %v373 = vrot.slane %v173, %v372
    %v374 = vsel %vm272, %v373, %v369
    %v375 = vlaneseq
    %v376 = vshrl.u32 %v375, 7
    %v377 = vsub.s32 %v274, %v376
    %v378 = vrot.slane %v176, %v377
    %v379 = vsel %vm279, %v378, %v374
    %v380 = vlaneseq
    %v381 = vshrl.u32 %v380, 7
    %v382 = vsub.s32 %v281, %v381
    %v383 = vrot.slane %v179, %v382
    %v384 = vsel %vm286, %v383, %v379
    %v385 = vlaneseq
    %v386 = vshrl.u32 %v385, 7
    %v387 = vsub.s32 %v288, %v386
    %v388 = vrot.slane %v182, %v387
    %v389 = vsel %vm293, %v388, %v384
    %v390 = vlaneseq
    %v391 = vshrl.u32 %v390, 7
    %v392 = vsub.s32 %v295, %v391
    %v393 = vrot.slane %v185, %v392
    %v394 = vsel %vm300, %v393, %v389
    %v395 = vlaneseq
    %v396 = vshrl.u32 %v395, 7
    %v397 = vsub.s32 %v302, %v396
    %v398 = vrot.slane %v188, %v397
    %v399 = vsel %vm307, %v398, %v394
    %v400 = vlaneseq
    %v401 = vshrl.u32 %v400, 7
    %v402 = vsub.s32 %v309, %v401
    %v403 = vrot.slane %v191, %v402
    %v404 = vsel %vm314, %v403, %v399
    %v405 = vlaneseq
    %v406 = vshrl.u32 %v405, 7
    %v407 = vsub.s32 %v316, %v406
    %v408 = vrot.slane %v194, %v407
    %v409 = vsel %vm321, %v408, %v404
    %v410 = vlaneseq
    %v411 = vshrl.u32 %v410, 7
    %v412 = vsub.s32 %v323, %v411
    %v413 = vrot.slane %v197, %v412
    %v414 = vsel %vm328, %v413, %v409
    %v415 = vlaneseq
    %v416 = vshrl.u32 %v415, 7
    %v417 = vsub.s32 %v330, %v416
    %v418 = vrot.slane %v200, %v417
    %v419 = vsel %vm335, %v418, %v414
    %v420 = vlaneseq
    %v421 = vshrl.u32 %v420, 7
    %v422 = vsub.s32 %v337, %v421
    %v423 = vrot.slane %v203, %v422
    %v424 = vsel %vm342, %v423, %v419
    %v425 = vlaneseq
    %v426 = vshrl.u32 %v425, 7
    %v427 = vsub.s32 %v344, %v426
    %v428 = vrot.slane %v206, %v427
    %v429 = vsel %vm349, %v428, %v424
    %vm430 = vcmask 1041409
    %v431 = vsel %vm430, %v429, %v350
    %v433 = vsel %vm209, %v431, -inf
    %vm434 = vcmask 1041408
    %v435 = vsel %vm434, %v433, -inf
    %436 = vmax.xlane.f32.xlu0 %v435
    %v437 = vpop.xlane.xlu0 %436
    %v438 = vsub.f32 %v433, %v437
    %v439 = vmul.f32 %v438, 1.442695
    %v440 = vpow.pop %v439
    %v441 = vsel %vm434, %v440, 0.0
    %442 = vadd.xlane.f32.xlu0 %v441
    %v443 = vpop.xlane.xlu0 %442
    %v444 = vrcp.pop %v443
    %v445 = vmul.f32 %v440, %v444
    %446 = vst [vmem:[#allocation2] sm:$0x3] %v445
    // Predicated region
    $region10: #{tpu_custom_call.1} parent=1 // pred_check
      _
    $region11: #{tpu_custom_call.1} parent=1 // pred_check_branch
      %448 = sbr.rel (0) target = $region13
    $region12: #{tpu_custom_call.1} parent=1 // pred_region
      %s450 = ssub.s32 32, 32
      %451 = vsyncadd [#allocation3], %s450
      %s453 = sshll.u32 [#allocation2], 4
      %s454 = int_to_ptr.vmem [resolvable:$true] %s453
      %456 = dma.vmem_to_hbm [thread:$0]  %s454, 32, %s2, [#allocation3]
    $region13: #{tpu_custom_call.1} parent=1 // pred_fallthru
      _
    // Predicated region
    $region14: #{tpu_custom_call.1} parent=1 // pred_check
      _
    $region15: #{tpu_custom_call.1} parent=1 // pred_check_branch
      %458 = sbr.rel (0) target = $region17
    $region16: #{tpu_custom_call.1} parent=1 // pred_region
      %459 = dma.done [#allocation3], 32
    $region17: #{tpu_custom_call.1} parent=1 // pred_fallthru
      _
    %460 = vsyncpa [#allocation3], 1

</llo_original>
